<compile_context>
chip_gen: v6e
topology: v6e:2x2x1
jax: 0.10.0
libtpu: 0.0.40
codegen_flags: <defaults>
</compile_context>

<pallas_src>
import functools

import jax
import jax.numpy as jnp
import numpy as np
from jax.experimental import pallas as pl
from jax.experimental.pallas import tpu as pltpu

EPS = 1e-5


def _round_up(n, m):
    return (n + m - 1) // m * m


def _critic_kernel(x_ref, a_ref, p_ref, out_ref, s1, q1, s2, q2, *, batch):
    """3-pass batch-tiled DDPG critic forward.

    x_ref: (obs, TB)  transposed obs tile (possibly bf16)
    a_ref: (act, TB)  transposed action tile (possibly bf16)
    p_ref: (32, C)    packed f32 parameter slab
    out_ref: (1, TB)  lane-dense output tile (f32)
    s1/q1: (8, 1)     layer-1 sum / sum-of-squares accumulators (f32)
    s2/q2: (6, 1)     layer-2 sum / sum-of-squares accumulators (f32)
    """
    obs = x_ref.shape[0]
    act = a_ref.shape[0]
    tb = x_ref.shape[1]
    p = pl.program_id(0)   # pass index: 0=layer-1 stats, 1=layer-2 stats, 2=output
    t = pl.program_id(1)   # batch tile index
    inv_b = 1.0 / float(batch)

    @pl.when(jnp.logical_and(p == 0, t == 0))
    def _():
        s1[...] = jnp.zeros_like(s1)
        q1[...] = jnp.zeros_like(q1)
        s2[...] = jnp.zeros_like(s2)
        q2[...] = jnp.zeros_like(q2)

    # ---- obs_net Linear(obs, 8), transposed & lane-dense: (8, TB) ----
    # (bias dropped: cancelled exactly by the BN mean subtraction)
    x = x_ref[...]
    w1t = p_ref[0:8, 0:obs].astype(x.dtype)
    h_pre = jnp.dot(w1t, x, preferred_element_type=jnp.float32)   # (8, TB) f32
    # Padded batch lanes of x are zero, so h_pre is exactly zero there and
    # contributes nothing to the sums below.

    @pl.when(p == 0)
    def _():  # pass 0: accumulate layer-1 BN statistics
        s1[...] += jnp.sum(h_pre, axis=1, keepdims=True)
        q1[...] += jnp.sum(h_pre * h_pre, axis=1, keepdims=True)
        out_ref[...] = jnp.zeros_like(out_ref)   # deterministic placeholder write

    @pl.when(p > 0)
    def _():
        a = a_ref[...]
        g1 = p_ref[24:32, 0:1]
        be1 = p_ref[24:32, 1:2]
        mu1 = s1[...] * inv_b
        var1 = jnp.maximum(q1[...] * inv_b - mu1 * mu1, 0.0)
        sc1 = g1 * jax.lax.rsqrt(var1 + EPS)
        h = jnp.maximum((h_pre - mu1) * sc1 + be1, 0.0)           # (8, TB)

        # Zero padded batch lanes so they cannot pollute layer-2 statistics.
        lane = jax.lax.broadcasted_iota(jnp.int32, (1, tb), 1) + t * tb
        h = jnp.where(lane < batch, h, 0.0)

        # ---- out_net Linear(8+act, 6) via split concat, transposed ----
        w2ot = p_ref[8:14, 0:8]                                    # (6, 8) f32
        w2at = p_ref[16:22, 0:act].astype(a.dtype)                 # (6, act)
        z_pre = (jnp.dot(w2ot, h, preferred_element_type=jnp.float32)
                 + jnp.dot(w2at, a, preferred_element_type=jnp.float32))  # (6, TB)

        @pl.when(p == 1)
        def _():  # pass 1: accumulate layer-2 BN statistics
            s2[...] += jnp.sum(z_pre, axis=1, keepdims=True)
            q2[...] += jnp.sum(z_pre * z_pre, axis=1, keepdims=True)
            out_ref[...] = jnp.zeros_like(out_ref)

        @pl.when(p == 2)
        def _():  # pass 2: normalize layer 2 and emit the lane-dense output row
            g2 = p_ref[24:30, 2:3]
            be2 = p_ref[24:30, 3:4]
            w3c = p_ref[24:30, 4:5]                                # (6, 1)
            b3 = p_ref[24:25, 5:6]                                 # (1, 1)
            mu2 = s2[...] * inv_b
            var2 = jnp.maximum(q2[...] * inv_b - mu2 * mu2, 0.0)
            sc2 = g2 * jax.lax.rsqrt(var2 + EPS)
            z = jnp.maximum((z_pre - mu2) * sc2 + be2, 0.0)        # (6, TB)
            # Final Linear(6, 1): tiny sublane reduce instead of a 1-row matmul.
            out_ref[...] = jnp.sum(w3c * z, axis=0, keepdims=True) + b3


def ddpg_critic_forward(x, a, params, *, matmul_dtype=jnp.float32, batch_tile=1024):
    """x: (B, obs) f32, a: (B, act) f32 -> (B, 1) f32 (training-mode BN)."""
    B, obs = x.shape
    Ba, act = a.shape
    assert Ba == B
    # 128-aligned batch tile -> lane-dense, unmasked full-lane stores and a
    # BlockSpec that meets the (8,128) constraint; batch padded with zero columns.
    tb = _round_up(min(batch_tile, B), 128)
    bp = _round_up(B, tb)
    nbt = bp // tb

    xT = jnp.zeros((obs, bp), matmul_dtype).at[:, :B].set(x.T.astype(matmul_dtype))
    aT = jnp.zeros((act, bp), matmul_dtype).at[:, :B].set(a.T.astype(matmul_dtype))
    pslab = params["pslab"]

    out = pl.pallas_call(
        functools.partial(_critic_kernel, batch=B),
        out_shape=jax.ShapeDtypeStruct((1, bp), jnp.float32),
        grid_spec=pltpu.PrefetchScalarGridSpec(
            num_scalar_prefetch=0,
            grid=(3, nbt),                      # (pass, batch tile); last axis fastest
            in_specs=[
                pl.BlockSpec((obs, tb), lambda p, t: (0, t)),
                pl.BlockSpec((act, tb), lambda p, t: (0, t)),
                pl.BlockSpec(pslab.shape, lambda p, t: (0, 0)),   # resident param slab
            ],
            out_specs=pl.BlockSpec((1, tb), lambda p, t: (0, t)),
            scratch_shapes=[
                pltpu.VMEM((8, 1), jnp.float32),   # layer-1 sum
                pltpu.VMEM((8, 1), jnp.float32),   # layer-1 sum of squares
                pltpu.VMEM((6, 1), jnp.float32),   # layer-2 sum
                pltpu.VMEM((6, 1), jnp.float32),   # layer-2 sum of squares
            ],
        ),
        compiler_params=pltpu.CompilerParams(
            # Both axes sequential: pass ordering and cross-tile stat accumulation
            # require it (see v7x megacore TODO at top of file).
            dimension_semantics=("arbitrary", "arbitrary"),
            # Per-tile double-buffered footprint is a few hundred KiB; 32 MiB is
            # within the scoped/physical VMEM budget on v5e/v6e/v7x alike.
            vmem_limit_bytes=32 * 1024 * 1024,
        ),
    )(xT, aT, pslab)
    # (1, Bp) lane-dense -> (B, 1) PyTorch layout (drop padded lanes, reshape).
    return out[:, :B].reshape(B, 1)


def init_params(key, obs_size, act_size):
    """PyTorch-style (uniform +/- 1/sqrt(fan_in)) init + host-side slab packing."""
    ks = jax.random.split(key, 6)

    def unif(k, shape, fan_in):
        bound = 1.0 / np.sqrt(fan_in)
        return jax.random.uniform(k, shape, jnp.float32, -bound, bound)

    w1 = unif(ks[0], (obs_size, 8), obs_size)
    b1 = unif(ks[1], (1, 8), obs_size)                 # reference only (cancelled by BN)
    w2 = unif(ks[2], (8 + act_size, 6), 8 + act_size)  # Linear(8+act, 6) full weight
    b2 = unif(ks[3], (1, 6), 8 + act_size)             # reference only (cancelled by BN)
    w3 = unif(ks[4], (6, 1), 6)
    b3 = unif(ks[5], (1, 1), 6)

    g1 = jnp.ones((1, 8), jnp.float32)
    be1 = jnp.zeros((1, 8), jnp.float32)
    g2 = jnp.ones((1, 6), jnp.float32)
    be2 = jnp.zeros((1, 6), jnp.float32)

    # ---- pack everything into ONE f32 slab (transposed weights, col-vector BN) ----
    C = max(obs_size, act_size, 8)
    pslab = np.zeros((32, C), np.float32)
    pslab[0:8, 0:obs_size] = np.asarray(w1).T          # W1^T        (8, obs)
    pslab[8:14, 0:8] = np.asarray(w2[:8, :]).T         # W2o^T       (6, 8)
    pslab[16:22, 0:act_size] = np.asarray(w2[8:, :]).T  # W2a^T      (6, act)
    pslab[24:32, 0] = np.asarray(g1)[0]                # gamma1      (8,)
    pslab[24:32, 1] = np.asarray(be1)[0]               # beta1       (8,)
    pslab[24:30, 2] = np.asarray(g2)[0]                # gamma2      (6,)
    pslab[24:30, 3] = np.asarray(be2)[0]               # beta2       (6,)
    pslab[24:30, 4] = np.asarray(w3)[:, 0]             # w3 column   (6,)
    pslab[24, 5] = float(np.asarray(b3)[0, 0])         # b3 scalar

    return dict(
        pslab=jnp.asarray(pslab),
        # unpacked copies kept only for the pure-JAX reference check
        w1=w1, b1=b1, w2o=w2[:8, :], w2a=w2[8:, :], b2=b2,
        g1=g1, be1=be1, g2=g2, be2=be2, w3=w3, b3=b3,
    )


def _reference(x, a, p):
    """Pure-JAX reference WITH the pre-BN biases (validates the cancellation)."""
    h = x @ p["w1"] + p["b1"]
    mu = h.mean(0, keepdims=True)
    var = ((h - mu) ** 2).mean(0, keepdims=True)
    h = jnp.maximum((h - mu) / jnp.sqrt(var + EPS) * p["g1"] + p["be1"], 0.0)
    z = h @ p["w2o"] + a @ p["w2a"] + p["b2"]
    mu2 = z.mean(0, keepdims=True)
    var2 = ((z - mu2) ** 2).mean(0, keepdims=True)
    z = jnp.maximum((z - mu2) / jnp.sqrt(var2 + EPS) * p["g2"] + p["be2"], 0.0)
    return z @ p["w3"] + p["b3"]


if __name__ == "__main__":
    OBS, ACT = 16, 4
    key = jax.random.PRNGKey(0)
    kp, kx1, ka1, kx2, ka2 = jax.random.split(key, 5)
    params = init_params(kp, OBS, ACT)

    # ---- Test 1: tiny batch (single 128-lane tile), f32 operands ----
    B1 = 8
    x1 = jax.random.normal(kx1, (B1, OBS), jnp.float32)
    a1 = jax.random.normal(ka1, (B1, ACT), jnp.float32)
    out1 = jax.block_until_ready(ddpg_critic_forward(x1, a1, params))
    ref1 = _reference(x1, a1, params)
    np.testing.assert_allclose(np.asarray(out1), np.asarray(ref1), rtol=1e-3, atol=1e-3)
    assert out1.shape == (B1, 1)

    # ---- Test 2: multi-tile batch (3 tiles of 128, last tile partially padded) ----
    B2 = 300
    x2 = jax.random.normal(kx2, (B2, OBS), jnp.float32)
    a2 = jax.random.normal(ka2, (B2, ACT), jnp.float32)
    out2 = jax.block_until_ready(
        ddpg_critic_forward(x2, a2, params, batch_tile=128))
    ref2 = _reference(x2, a2, params)
    np.testing.assert_allclose(np.asarray(out2), np.asarray(ref2), rtol=1e-3, atol=1e-3)
    assert out2.shape == (B2, 1)

    # ---- Test 3: bf16 matmul operands (f32 accumulation, f32 BN statistics) ----
    out3 = jax.block_until_ready(
        ddpg_critic_forward(x2, a2, params, matmul_dtype=jnp.bfloat16, batch_tile=128))
    ref3 = _reference(x2.astype(jnp.bfloat16).astype(jnp.float32),
                      a2.astype(jnp.bfloat16).astype(jnp.float32), params)
    np.testing.assert_allclose(np.asarray(out3), np.asarray(ref3), rtol=5e-2, atol=5e-2)

    print("KERNEL_OK")
</pallas_src>

<mosaic_0001>
module attributes {stable_mosaic.version = 11 : i64} {
  func.func @_critic_kernel(%arg0: i32, %arg1: i32, %arg2: memref<16x128xf32, #tpu.memory_space<vmem>>, %arg3: memref<4x128xf32, #tpu.memory_space<vmem>>, %arg4: memref<32x16xf32, #tpu.memory_space<vmem>>, %arg5: memref<1x128xf32, #tpu.memory_space<vmem>>, %arg6: memref<8x1xf32, #tpu.memory_space<vmem>>, %arg7: memref<8x1xf32, #tpu.memory_space<vmem>>, %arg8: memref<6x1xf32, #tpu.memory_space<vmem>>, %arg9: memref<6x1xf32, #tpu.memory_space<vmem>>) attributes {dimension_semantics = [#tpu.dimension_semantics<arbitrary>, #tpu.dimension_semantics<arbitrary>], iteration_bounds = array<i64: 3, 1>, scalar_prefetch = 0 : i64, scratch_operands = 4 : i64, tpu.core_type = #tpu.core_type<tc>, window_params = [{transform_indices = @transform_0, window_bounds = array<i64: 16, 128>}, {transform_indices = @transform_1, window_bounds = array<i64: 4, 128>}, {pipeline_mode = #tpu.pipeline_mode<synchronous>, transform_indices = @transform_2, window_bounds = array<i64: 32, 16>}, {transform_indices = @transform_3, window_bounds = array<i64: 1, 128>}]} {
    %c0_i32 = arith.constant 0 : i32
    %0 = arith.cmpi eq, %arg0, %c0_i32 : i32
    %c0_i32_0 = arith.constant 0 : i32
    %1 = arith.cmpi eq, %arg1, %c0_i32_0 : i32
    %2 = arith.andi %0, %1 : i1
    %3 = arith.extui %2 : i1 to i32
    %c0_i32_1 = arith.constant 0 : i32
    %4 = arith.cmpi ne, %3, %c0_i32_1 : i32
    scf.if %4 {
      %cst_9 = arith.constant 0.000000e+00 : f32
      %14 = vector.broadcast %cst_9 : f32 to vector<8x1xf32>
      %c0_10 = arith.constant 0 : index
      %c0_11 = arith.constant 0 : index
      %15 = vector.load %arg6[%c0_10, %c0_11] : memref<8x1xf32, #tpu.memory_space<vmem>>, vector<8x1xf32>
      tpu.vector_store %arg6[%c0_10, %c0_11], %14 {strides = array<i32>} : memref<8x1xf32, #tpu.memory_space<vmem>>, vector<8x1xf32>,
      %cst_12 = arith.constant 0.000000e+00 : f32
      %16 = vector.broadcast %cst_12 : f32 to vector<8x1xf32>
      %c0_13 = arith.constant 0 : index
      %c0_14 = arith.constant 0 : index
      %17 = vector.load %arg7[%c0_13, %c0_14] : memref<8x1xf32, #tpu.memory_space<vmem>>, vector<8x1xf32>
      tpu.vector_store %arg7[%c0_13, %c0_14], %16 {strides = array<i32>} : memref<8x1xf32, #tpu.memory_space<vmem>>, vector<8x1xf32>,
      %cst_15 = arith.constant 0.000000e+00 : f32
      %18 = vector.broadcast %cst_15 : f32 to vector<6x1xf32>
      %c0_16 = arith.constant 0 : index
      %c0_17 = arith.constant 0 : index
      %19 = vector.load %arg8[%c0_16, %c0_17] : memref<6x1xf32, #tpu.memory_space<vmem>>, vector<6x1xf32>
      tpu.vector_store %arg8[%c0_16, %c0_17], %18 {strides = array<i32>} : memref<6x1xf32, #tpu.memory_space<vmem>>, vector<6x1xf32>,
      %cst_18 = arith.constant 0.000000e+00 : f32
      %20 = vector.broadcast %cst_18 : f32 to vector<6x1xf32>
      %c0_19 = arith.constant 0 : index
      %c0_20 = arith.constant 0 : index
      %21 = vector.load %arg9[%c0_19, %c0_20] : memref<6x1xf32, #tpu.memory_space<vmem>>, vector<6x1xf32>
      tpu.vector_store %arg9[%c0_19, %c0_20], %20 {strides = array<i32>} : memref<6x1xf32, #tpu.memory_space<vmem>>, vector<6x1xf32>,
    } else {
    }
    %c0 = arith.constant 0 : index
    %c0_2 = arith.constant 0 : index
    %5 = vector.load %arg2[%c0, %c0_2] : memref<16x128xf32, #tpu.memory_space<vmem>>, vector<16x128xf32>
    %c0_3 = arith.constant 0 : index
    %c0_4 = arith.constant 0 : index
    %6 = vector.load %arg4[%c0_3, %c0_4] : memref<32x16xf32, #tpu.memory_space<vmem>>, vector<8x16xf32>
    %cst = arith.constant dense<0.000000e+00> : vector<8x128xf32>
    %7 = tpu.matmul %6, %5, %cst {dimension_numbers = #tpu.dot_dimension_numbers<[1], [0], [0], [1], [0, 0, 1, 1], [], []>} : vector<8x16xf32>, vector<16x128xf32>, vector<8x128xf32> -> vector<8x128xf32>
    %c0_i32_5 = arith.constant 0 : i32
    %8 = arith.cmpi eq, %arg0, %c0_i32_5 : i32
    %9 = arith.extui %8 : i1 to i32
    %c0_i32_6 = arith.constant 0 : i32
    %10 = arith.cmpi ne, %9, %c0_i32_6 : i32
    scf.if %10 {
      %c0_9 = arith.constant 0 : index
      %c0_10 = arith.constant 0 : index
      %14 = vector.load %arg6[%c0_9, %c0_10] : memref<8x1xf32, #tpu.memory_space<vmem>>, vector<8x1xf32>
      %cst_11 = arith.constant dense<0.000000e+00> : vector<8xf32>
      %15 = vector.multi_reduction <add>, %7, %cst_11 [1] : vector<8x128xf32> to vector<8xf32>
      %16 = vector.shape_cast %15 : vector<8xf32> to vector<8x1xf32>
      %17 = arith.addf %14, %16 : vector<8x1xf32>
      %c0_12 = arith.constant 0 : index
      %c0_13 = arith.constant 0 : index
      %18 = vector.load %arg6[%c0_12, %c0_13] : memref<8x1xf32, #tpu.memory_space<vmem>>, vector<8x1xf32>
      tpu.vector_store %arg6[%c0_12, %c0_13], %17 {strides = array<i32>} : memref<8x1xf32, #tpu.memory_space<vmem>>, vector<8x1xf32>,
      %c0_14 = arith.constant 0 : index
      %c0_15 = arith.constant 0 : index
      %19 = vector.load %arg7[%c0_14, %c0_15] : memref<8x1xf32, #tpu.memory_space<vmem>>, vector<8x1xf32>
      %20 = arith.mulf %7, %7 : vector<8x128xf32>
      %cst_16 = arith.constant dense<0.000000e+00> : vector<8xf32>
      %21 = vector.multi_reduction <add>, %20, %cst_16 [1] : vector<8x128xf32> to vector<8xf32>
      %22 = vector.shape_cast %21 : vector<8xf32> to vector<8x1xf32>
      %23 = arith.addf %19, %22 : vector<8x1xf32>
      %c0_17 = arith.constant 0 : index
      %c0_18 = arith.constant 0 : index
      %24 = vector.load %arg7[%c0_17, %c0_18] : memref<8x1xf32, #tpu.memory_space<vmem>>, vector<8x1xf32>
      tpu.vector_store %arg7[%c0_17, %c0_18], %23 {strides = array<i32>} : memref<8x1xf32, #tpu.memory_space<vmem>>, vector<8x1xf32>,
      %cst_19 = arith.constant 0.000000e+00 : f32
      %25 = vector.broadcast %cst_19 : f32 to vector<1x128xf32>
      %c0_20 = arith.constant 0 : index
      %c0_21 = arith.constant 0 : index
      %26 = vector.load %arg5[%c0_20, %c0_21] : memref<1x128xf32, #tpu.memory_space<vmem>>, vector<1x128xf32>
      tpu.vector_store %arg5[%c0_20, %c0_21], %25 {strides = array<i32>} : memref<1x128xf32, #tpu.memory_space<vmem>>, vector<1x128xf32>,
    } else {
    }
    %c0_i32_7 = arith.constant 0 : i32
    %11 = arith.cmpi sgt, %arg0, %c0_i32_7 : i32
    %12 = arith.extui %11 : i1 to i32
    %c0_i32_8 = arith.constant 0 : i32
    %13 = arith.cmpi ne, %12, %c0_i32_8 : i32
    scf.if %13 {
      %c0_9 = arith.constant 0 : index
      %c0_10 = arith.constant 0 : index
      %14 = vector.load %arg3[%c0_9, %c0_10] : memref<4x128xf32, #tpu.memory_space<vmem>>, vector<4x128xf32>
      %c24 = arith.constant 24 : index
      %c0_11 = arith.constant 0 : index
      %15 = vector.load %arg4[%c24, %c0_11] : memref<32x16xf32, #tpu.memory_space<vmem>>, vector<8x1xf32>
      %c24_12 = arith.constant 24 : index
      %c1 = arith.constant 1 : index
      %16 = vector.load %arg4[%c24_12, %c1] : memref<32x16xf32, #tpu.memory_space<vmem>>, vector<8x1xf32>
      %c0_13 = arith.constant 0 : index
      %c0_14 = arith.constant 0 : index
      %17 = vector.load %arg6[%c0_13, %c0_14] : memref<8x1xf32, #tpu.memory_space<vmem>>, vector<8x1xf32>
      %cst_15 = arith.constant 1.250000e-01 : f32
      %18 = vector.broadcast %cst_15 : f32 to vector<8x1xf32>
      %19 = arith.mulf %17, %18 : vector<8x1xf32>
      %c0_16 = arith.constant 0 : index
      %c0_17 = arith.constant 0 : index
      %20 = vector.load %arg7[%c0_16, %c0_17] : memref<8x1xf32, #tpu.memory_space<vmem>>, vector<8x1xf32>
      %cst_18 = arith.constant 1.250000e-01 : f32
      %21 = vector.broadcast %cst_18 : f32 to vector<8x1xf32>
      %22 = arith.mulf %20, %21 : vector<8x1xf32>
      %23 = arith.mulf %19, %19 : vector<8x1xf32>
      %24 = arith.subf %22, %23 : vector<8x1xf32>
      %cst_19 = arith.constant 0.000000e+00 : f32
      %25 = vector.broadcast %cst_19 : f32 to vector<8x1xf32>
      %26 = arith.maximumf %24, %25 : vector<8x1xf32>
      %cst_20 = arith.constant 9.99999974E-6 : f32
      %27 = vector.broadcast %cst_20 : f32 to vector<8x1xf32>
      %28 = arith.addf %26, %27 : vector<8x1xf32>
      %29 = math.rsqrt %28 : vector<8x1xf32>
      %30 = arith.mulf %15, %29 : vector<8x1xf32>
      %31 = vector.broadcast %19 : vector<8x1xf32> to vector<8x128xf32>
      %32 = arith.subf %7, %31 : vector<8x128xf32>
      %33 = vector.broadcast %30 : vector<8x1xf32> to vector<8x128xf32>
      %34 = arith.mulf %32, %33 : vector<8x128xf32>
      %35 = vector.broadcast %16 : vector<8x1xf32> to vector<8x128xf32>
      %36 = arith.addf %34, %35 : vector<8x128xf32>
      %cst_21 = arith.constant 0.000000e+00 : f32
      %37 = vector.broadcast %cst_21 : f32 to vector<8x128xf32>
      %38 = arith.maximumf %36, %37 : vector<8x128xf32>
      %39 = tpu.iota {dimensions = array<i32: 1>} : vector<1x128xi32>
      %c128_i32 = arith.constant 128 : i32
      %40 = arith.muli %arg1, %c128_i32 : i32
      %41 = vector.broadcast %40 : i32 to vector<1x128xi32>
      %42 = arith.addi %39, %41 : vector<1x128xi32>
      %c8_i32 = arith.constant 8 : i32
      %43 = vector.broadcast %c8_i32 : i32 to vector<1x128xi32>
      %44 = arith.cmpi slt, %42, %43 : vector<1x128xi32>
      %cst_22 = arith.constant 0.000000e+00 : f32
      %45 = vector.shape_cast %44 : vector<1x128xi1> to vector<1x128xi1>
      %46 = vector.broadcast %45 : vector<1x128xi1> to vector<8x128xi1>
      %47 = vector.broadcast %cst_22 : f32 to vector<8x128xf32>
      %48 = arith.select %46, %38, %47 : vector<8x128xi1>, vector<8x128xf32>
      %c8 = arith.constant 8 : index
      %c0_23 = arith.constant 0 : index
      %49 = vector.load %arg4[%c8, %c0_23] : memref<32x16xf32, #tpu.memory_space<vmem>>, vector<6x8xf32>
      %c16 = arith.constant 16 : index
      %c0_24 = arith.constant 0 : index
      %50 = vector.load %arg4[%c16, %c0_24] : memref<32x16xf32, #tpu.memory_space<vmem>>, vector<6x4xf32>
      %cst_25 = arith.constant dense<0.000000e+00> : vector<6x128xf32>
      %51 = tpu.matmul %49, %48, %cst_25 {dimension_numbers = #tpu.dot_dimension_numbers<[1], [0], [0], [1], [0, 0, 1, 1], [], []>} : vector<6x8xf32>, vector<8x128xf32>, vector<6x128xf32> -> vector<6x128xf32>
      %cst_26 = arith.constant dense<0.000000e+00> : vector<6x128xf32>
      %52 = tpu.matmul %50, %14, %cst_26 {dimension_numbers = #tpu.dot_dimension_numbers<[1], [0], [0], [1], [0, 0, 1, 1], [], []>} : vector<6x4xf32>, vector<4x128xf32>, vector<6x128xf32> -> vector<6x128xf32>
      %53 = arith.addf %51, %52 : vector<6x128xf32>
      %c1_i32 = arith.constant 1 : i32
      %54 = arith.cmpi eq, %arg0, %c1_i32 : i32
      %55 = arith.extui %54 : i1 to i32
      %c0_i32_27 = arith.constant 0 : i32
      %56 = arith.cmpi ne, %55, %c0_i32_27 : i32
      scf.if %56 {
        %c0_29 = arith.constant 0 : index
        %c0_30 = arith.constant 0 : index
        %60 = vector.load %arg8[%c0_29, %c0_30] : memref<6x1xf32, #tpu.memory_space<vmem>>, vector<6x1xf32>
        %cst_31 = arith.constant dense<0.000000e+00> : vector<6xf32>
        %61 = vector.multi_reduction <add>, %53, %cst_31 [1] : vector<6x128xf32> to vector<6xf32>
        %62 = vector.shape_cast %61 : vector<6xf32> to vector<6x1xf32>
        %63 = arith.addf %60, %62 : vector<6x1xf32>
        %c0_32 = arith.constant 0 : index
        %c0_33 = arith.constant 0 : index
        %64 = vector.load %arg8[%c0_32, %c0_33] : memref<6x1xf32, #tpu.memory_space<vmem>>, vector<6x1xf32>
        tpu.vector_store %arg8[%c0_32, %c0_33], %63 {strides = array<i32>} : memref<6x1xf32, #tpu.memory_space<vmem>>, vector<6x1xf32>,
        %c0_34 = arith.constant 0 : index
        %c0_35 = arith.constant 0 : index
        %65 = vector.load %arg9[%c0_34, %c0_35] : memref<6x1xf32, #tpu.memory_space<vmem>>, vector<6x1xf32>
        %66 = arith.mulf %53, %53 : vector<6x128xf32>
        %cst_36 = arith.constant dense<0.000000e+00> : vector<6xf32>
        %67 = vector.multi_reduction <add>, %66, %cst_36 [1] : vector<6x128xf32> to vector<6xf32>
        %68 = vector.shape_cast %67 : vector<6xf32> to vector<6x1xf32>
        %69 = arith.addf %65, %68 : vector<6x1xf32>
        %c0_37 = arith.constant 0 : index
        %c0_38 = arith.constant 0 : index
        %70 = vector.load %arg9[%c0_37, %c0_38] : memref<6x1xf32, #tpu.memory_space<vmem>>, vector<6x1xf32>
        tpu.vector_store %arg9[%c0_37, %c0_38], %69 {strides = array<i32>} : memref<6x1xf32, #tpu.memory_space<vmem>>, vector<6x1xf32>,
        %cst_39 = arith.constant 0.000000e+00 : f32
        %71 = vector.broadcast %cst_39 : f32 to vector<1x128xf32>
        %c0_40 = arith.constant 0 : index
        %c0_41 = arith.constant 0 : index
        %72 = vector.load %arg5[%c0_40, %c0_41] : memref<1x128xf32, #tpu.memory_space<vmem>>, vector<1x128xf32>
        tpu.vector_store %arg5[%c0_40, %c0_41], %71 {strides = array<i32>} : memref<1x128xf32, #tpu.memory_space<vmem>>, vector<1x128xf32>,
      } else {
      }
      %c2_i32 = arith.constant 2 : i32
      %57 = arith.cmpi eq, %arg0, %c2_i32 : i32
      %58 = arith.extui %57 : i1 to i32
      %c0_i32_28 = arith.constant 0 : i32
      %59 = arith.cmpi ne, %58, %c0_i32_28 : i32
      scf.if %59 {
        %c24_29 = arith.constant 24 : index
        %c2 = arith.constant 2 : index
        %60 = vector.load %arg4[%c24_29, %c2] : memref<32x16xf32, #tpu.memory_space<vmem>>, vector<6x1xf32>
        %c24_30 = arith.constant 24 : index
        %c3 = arith.constant 3 : index
        %61 = vector.load %arg4[%c24_30, %c3] : memref<32x16xf32, #tpu.memory_space<vmem>>, vector<6x1xf32>
        %c24_31 = arith.constant 24 : index
        %c4 = arith.constant 4 : index
        %62 = vector.load %arg4[%c24_31, %c4] : memref<32x16xf32, #tpu.memory_space<vmem>>, vector<6x1xf32>
        %c24_32 = arith.constant 24 : index
        %c5 = arith.constant 5 : index
        %63 = vector.load %arg4[%c24_32, %c5] : memref<32x16xf32, #tpu.memory_space<vmem>>, vector<1x1xf32>
        %c0_33 = arith.constant 0 : index
        %c0_34 = arith.constant 0 : index
        %64 = vector.load %arg8[%c0_33, %c0_34] : memref<6x1xf32, #tpu.memory_space<vmem>>, vector<6x1xf32>
        %cst_35 = arith.constant 1.250000e-01 : f32
        %65 = vector.broadcast %cst_35 : f32 to vector<6x1xf32>
        %66 = arith.mulf %64, %65 : vector<6x1xf32>
        %c0_36 = arith.constant 0 : index
        %c0_37 = arith.constant 0 : index
        %67 = vector.load %arg9[%c0_36, %c0_37] : memref<6x1xf32, #tpu.memory_space<vmem>>, vector<6x1xf32>
        %cst_38 = arith.constant 1.250000e-01 : f32
        %68 = vector.broadcast %cst_38 : f32 to vector<6x1xf32>
        %69 = arith.mulf %67, %68 : vector<6x1xf32>
        %70 = arith.mulf %66, %66 : vector<6x1xf32>
        %71 = arith.subf %69, %70 : vector<6x1xf32>
        %cst_39 = arith.constant 0.000000e+00 : f32
        %72 = vector.broadcast %cst_39 : f32 to vector<6x1xf32>
        %73 = arith.maximumf %71, %72 : vector<6x1xf32>
        %cst_40 = arith.constant 9.99999974E-6 : f32
        %74 = vector.broadcast %cst_40 : f32 to vector<6x1xf32>
        %75 = arith.addf %73, %74 : vector<6x1xf32>
        %76 = math.rsqrt %75 : vector<6x1xf32>
        %77 = arith.mulf %60, %76 : vector<6x1xf32>
        %78 = vector.broadcast %66 : vector<6x1xf32> to vector<6x128xf32>
        %79 = arith.subf %53, %78 : vector<6x128xf32>
        %80 = vector.broadcast %77 : vector<6x1xf32> to vector<6x128xf32>
        %81 = arith.mulf %79, %80 : vector<6x128xf32>
        %82 = vector.broadcast %61 : vector<6x1xf32> to vector<6x128xf32>
        %83 = arith.addf %81, %82 : vector<6x128xf32>
        %cst_41 = arith.constant 0.000000e+00 : f32
        %84 = vector.broadcast %cst_41 : f32 to vector<6x128xf32>
        %85 = arith.maximumf %83, %84 : vector<6x128xf32>
        %86 = vector.broadcast %62 : vector<6x1xf32> to vector<6x128xf32>
        %87 = arith.mulf %86, %85 : vector<6x128xf32>
        %cst_42 = arith.constant dense<0.000000e+00> : vector<128xf32>
        %88 = vector.multi_reduction <add>, %87, %cst_42 [0] : vector<6x128xf32> to vector<128xf32>
        %89 = vector.shape_cast %88 : vector<128xf32> to vector<1x128xf32>
        %90 = vector.broadcast %63 : vector<1x1xf32> to vector<1x128xf32>
        %91 = arith.addf %89, %90 : vector<1x128xf32>
        %c0_43 = arith.constant 0 : index
        %c0_44 = arith.constant 0 : index
        %92 = vector.load %arg5[%c0_43, %c0_44] : memref<1x128xf32, #tpu.memory_space<vmem>>, vector<1x128xf32>
        tpu.vector_store %arg5[%c0_43, %c0_44], %91 {strides = array<i32>} : memref<1x128xf32, #tpu.memory_space<vmem>>, vector<1x128xf32>,
      } else {
      }
    } else {
    }
    return
  }
  func.func @transform_0(%arg0: i32, %arg1: i32) -> (i32, i32) {
    %c0_i32 = arith.constant 0 : i32
    %c0_i32_0 = arith.constant 0 : i32
    return %c0_i32, %arg1 : i32, i32
  }
  func.func @transform_1(%arg0: i32, %arg1: i32) -> (i32, i32) {
    %c0_i32 = arith.constant 0 : i32
    %c0_i32_0 = arith.constant 0 : i32
    return %c0_i32, %arg1 : i32, i32
  }
  func.func @transform_2(%arg0: i32, %arg1: i32) -> (i32, i32) {
    %c0_i32 = arith.constant 0 : i32
    %c0_i32_0 = arith.constant 0 : i32
    %c0_i32_1 = arith.constant 0 : i32
    return %c0_i32, %c0_i32_0 : i32, i32
  }
  func.func @transform_3(%arg0: i32, %arg1: i32) -> (i32, i32) {
    %c0_i32 = arith.constant 0 : i32
    %c0_i32_0 = arith.constant 0 : i32
    return %c0_i32, %arg1 : i32, i32
  }
}

</mosaic_0001>

<llo_original>
// kernel: tpu_custom_call.1
$region0: #{tpu_custom_call.1}
  #allocation0 [shape = 'u32[]', space=smem, size = 0x4, offset = 0x4, fixed_abs, tag = 'smem constant byte address 0x4 - core index']
  #allocation1 [shape = 'u32[144,128]{1,0:T(1,128)}', space=vmem, size = 0x12000, scoped, tag = 'internal scratch']
  #allocation2 [shape = 'f32[8,1]{1,0:T(8,128)}', space=vmem, size = 0x1000, scoped, tag = 'scratch operand']
  #allocation3 [shape = 'f32[8,1]{1,0:T(8,128)}', space=vmem, size = 0x1000, scoped, tag = 'scratch operand']
  #allocation4 [shape = 'f32[6,1]{1,0:T(8,128)}', space=vmem, size = 0x1000, scoped, tag = 'scratch operand']
  #allocation5 [shape = 'f32[6,1]{1,0:T(8,128)}', space=vmem, size = 0x1000, scoped, tag = 'scratch operand']
  %s0 = inlined_call_operand.vmem [shape: f32[16,128], index: 0, kind: input, shape index: {}]
  %s1 = inlined_call_operand.vmem [shape: f32[4,128], index: 1, kind: input, shape index: {}]
  %s2 = inlined_call_operand.vmem [shape: f32[32,16], index: 2, kind: input, shape index: {}]
  %s3 = inlined_call_operand.hbm [shape: f32[1,128], index: 3, kind: output, shape index: {}]
  %s4 = sld [smem:[#allocation0]]
  $region65: #{tpu_custom_call.1} parent=0
    _
  %s6 = ssub.s32 1, %s4
  %s7 = scalar_select 0, %s6, %s4
  $region1: #{tpu_custom_call.1} parent=0
    #allocation6 [shape = 'u8[512]{0}', space=vmem, size = 0x400, scoped, tag = 'output window, operand 0, single buffered']
    #allocation7 [shape = 's32[2]{0}', space=sflag, size = 0x8, scoped, tag = 'scoped memory for tpu_custom_call.1']
    %8 = vsyncpa [#allocation7], 0
    loop: start=0, step=1, limit=5
    $region2: #{tpu_custom_call.1} parent=1 // loop_pre_header
      _
    $region3: #{tpu_custom_call.1} parent=1 // loop_header
      %s10 = sphi 0, %s14
      %p11 = scmp.ge.s32.totalorder %s10, 5
      %s17 = sphi 0, %s29
      %s18 = sphi 0, %s25
      %s19 = sphi 0, %s17
      %s20 = sphi 0, %s18
      %s21 = sphi 0, %s19
      %s22 = sphi 0, %s20
      %s32 = sphi 0, %s34
      %s35 = sphi 0, %s32
      %s36 = sphi 0, %s35
      %s52 = sphi 0, %s36
      %s58 = sphi 0, %s60
      %s61 = sphi 0, %s58
      %s62 = sphi 0, %s61
      %s78 = sphi 0, %s62
      %s82 = sphi 0, %s82
      %s84 = sphi 0, %s82
      %s85 = sphi 0, %s84
      %s99 = sphi 0, %s85
      %s105 = sphi 0, %s107
      %s108 = sphi 0, %s105
      %s109 = sphi 0, %s108
      %s125 = sphi 0, %s109
    $region4: #{tpu_custom_call.1} parent=1 // loop_header_branch
      %13 = sbr.rel (%p11) target = $region8
    $region5: #{tpu_custom_call.1} parent=1 // loop_body
      %s15 = ssub.s32 %s10, 1
      %s16 = ssub.s32 %s10, 2
      %s23 = sadd.s32 1, %s18
      %p24 = scmp.ge.s32.totalorder %s23, 1
      %s25 = scalar_select %p24, 0, %s23
      %s26 = sadd.s32 1, %s17
      %s27 = scalar_select %p24, %s26, %s17
      %p28 = scmp.ge.s32.totalorder %s27, 3
      %s29 = scalar_select %p28, 0, %s27
      %s30 = ssub.s32 %s18, %s25
      %p31 = scmp.eq.s32.totalorder %s30, 0
      %s33 = sadd.s32 %s32, 1
      %s34 = scalar_select %p31, %s32, %s33
      %p37 = pneg %p31
      %p38 = scmp.eq.s32.totalorder %s10, 2
      %p39 = por %p37, %p38
      %p40 = scmp.ne.s32.totalorder %s32, %s35
      %p41 = scmp.eq.s32.totalorder %s10, 0
      %p42 = por %p40, %p41
      %p43 = scmp.ne.s32.totalorder %s32, %s35
      %p44 = scmp.eq.s32.totalorder %s15, 2
      %p45 = por %p43, %p44
      %p46 = scmp.ne.s32.totalorder %s35, %s36
      %p47 = scmp.eq.s32.totalorder %s15, 0
      %p48 = por %p46, %p47
      %p49 = scmp.ne.s32.totalorder %s35, %s36
      %p50 = scmp.eq.s32.totalorder %s16, 2
      %p51 = por %p49, %p50
      %p53 = scmp.ne.s32.totalorder %s36, %s52
      %p54 = scmp.eq.s32.totalorder %s16, 0
      %p55 = por %p53, %p54
      %s56 = ssub.s32 %s18, %s25
      %p57 = scmp.eq.s32.totalorder %s56, 0
      %s59 = sadd.s32 %s58, 1
      %s60 = scalar_select %p57, %s58, %s59
      %p63 = pneg %p57
      %p64 = scmp.eq.s32.totalorder %s10, 2
      %p65 = por %p63, %p64
      %p66 = scmp.ne.s32.totalorder %s58, %s61
      %p67 = scmp.eq.s32.totalorder %s10, 0
      %p68 = por %p66, %p67
      %p69 = scmp.ne.s32.totalorder %s58, %s61
      %p70 = scmp.eq.s32.totalorder %s15, 2
      %p71 = por %p69, %p70
      %p72 = scmp.ne.s32.totalorder %s61, %s62
      %p73 = scmp.eq.s32.totalorder %s15, 0
      %p74 = por %p72, %p73
      %p75 = scmp.ne.s32.totalorder %s61, %s62
      %p76 = scmp.eq.s32.totalorder %s16, 2
      %p77 = por %p75, %p76
      %p79 = scmp.ne.s32.totalorder %s62, %s78
      %p80 = scmp.eq.s32.totalorder %s16, 0
      %p81 = por %p79, %p80
      %s83 = sadd.s32 %s82, 1
      %p86 = scmp.eq.s32.totalorder %s10, 2
      %p87 = scmp.ne.s32.totalorder %s82, %s84
      %p88 = scmp.eq.s32.totalorder %s10, 0
      %p89 = por %p87, %p88
      %p90 = scmp.ne.s32.totalorder %s82, %s84
      %p91 = scmp.eq.s32.totalorder %s15, 2
      %p92 = por %p90, %p91
      %p93 = scmp.ne.s32.totalorder %s84, %s85
      %p94 = scmp.eq.s32.totalorder %s15, 0
      %p95 = por %p93, %p94
      %p96 = scmp.ne.s32.totalorder %s84, %s85
      %p97 = scmp.eq.s32.totalorder %s16, 2
      %p98 = por %p96, %p97
      %p100 = scmp.ne.s32.totalorder %s85, %s99
      %p101 = scmp.eq.s32.totalorder %s16, 0
      %p102 = por %p100, %p101
      %s103 = ssub.s32 %s18, %s25
      %p104 = scmp.eq.s32.totalorder %s103, 0
      %s106 = sadd.s32 %s105, 1
      %s107 = scalar_select %p104, %s105, %s106
      %p110 = pneg %p104
      %p111 = scmp.eq.s32.totalorder %s10, 2
      %p112 = por %p110, %p111
      %p113 = scmp.ne.s32.totalorder %s105, %s108
      %p114 = scmp.eq.s32.totalorder %s10, 0
      %p115 = por %p113, %p114
      %p116 = scmp.ne.s32.totalorder %s105, %s108
      %p117 = scmp.eq.s32.totalorder %s15, 2
      %p118 = por %p116, %p117
      %p119 = scmp.ne.s32.totalorder %s108, %s109
      %p120 = scmp.eq.s32.totalorder %s15, 0
      %p121 = por %p119, %p120
      %p122 = scmp.ne.s32.totalorder %s108, %s109
      %p123 = scmp.eq.s32.totalorder %s16, 2
      %p124 = por %p122, %p123
      %p126 = scmp.ne.s32.totalorder %s109, %s125
      %p127 = scmp.eq.s32.totalorder %s16, 0
      %p128 = por %p126, %p127
      %p129 = scmp.le.s32.totalorder 1, %s10
      %p130 = scmp.lt.s32.totalorder %s10, 4
      %p131 = pnand %p129, %p130
      %p132 = pneg %p131
      // Predicated region
      $region9: #{tpu_custom_call.1} parent=5 // pred_check
        _
      $region10: #{tpu_custom_call.1} parent=5 // pred_check_branch
        %134 = sbr.rel (%p131) target = $region12
      $region11: #{tpu_custom_call.1} parent=5 // pred_region
        %s135 = ssub.s32 %s10, 1
        // Predicated region
        $region13: #{tpu_custom_call.1} parent=11 // pred_check
          %p136 = pneg %p48
        $region14: #{tpu_custom_call.1} parent=11 // pred_check_branch
          %138 = sbr.rel (%p136) target = $region16
        $region15: #{tpu_custom_call.1} parent=11 // pred_region
          %p139 = scmp.lt.s32.totalorder %s20, 0
          %s140 = scalar_select %p139, %s20, 0
          %s141 = smul.addr %s140, 8
          %s142 = scalar_lea.vmem %s0, %s141
        $region16: #{tpu_custom_call.1} parent=11 // pred_fallthru
          _
        // Predicated region
        $region17: #{tpu_custom_call.1} parent=11 // pred_check
          %p143 = pneg %p74
        $region18: #{tpu_custom_call.1} parent=11 // pred_check_branch
          %145 = sbr.rel (%p143) target = $region20
        $region19: #{tpu_custom_call.1} parent=11 // pred_region
          %p146 = scmp.lt.s32.totalorder %s20, 0
          %s147 = scalar_select %p146, %s20, 0
          %s148 = smul.addr %s147, 4
          %s149 = scalar_lea.vmem %s1, %s148
        $region20: #{tpu_custom_call.1} parent=11 // pred_fallthru
          _
        // Predicated region
        $region21: #{tpu_custom_call.1} parent=11 // pred_check
          %p150 = pneg %p95
        $region22: #{tpu_custom_call.1} parent=11 // pred_check_branch
          %152 = sbr.rel (%p150) target = $region24
        $region23: #{tpu_custom_call.1} parent=11 // pred_region
          _
        $region24: #{tpu_custom_call.1} parent=11 // pred_fallthru
          _
      $region12: #{tpu_custom_call.1} parent=5 // pred_fallthru
        _
      %p153 = scmp.lt.s32.totalorder %s10, 3
      // Predicated region
      $region25: #{tpu_custom_call.1} parent=5 // pred_check
        %p154 = pneg %p153
      $region26: #{tpu_custom_call.1} parent=5 // pred_check_branch
        %156 = sbr.rel (%p154) target = $region28
      $region27: #{tpu_custom_call.1} parent=5 // pred_region
        _
      $region28: #{tpu_custom_call.1} parent=5 // pred_fallthru
        _
      %p157 = scmp.le.s32.totalorder 1, %s10
      %p158 = scmp.lt.s32.totalorder %s10, 4
      %p159 = pnand %p157, %p158
      %p160 = pneg %p159
      // Predicated region
      $region29: #{tpu_custom_call.1} parent=5 // pred_check
        _
      $region30: #{tpu_custom_call.1} parent=5 // pred_check_branch
        %162 = sbr.rel (%p159) target = $region32
      $region31: #{tpu_custom_call.1} parent=5 // pred_region
        %s163 = ssub.s32 %s10, 1
        %p164 = scmp.lt.s32.totalorder %s20, 0
        %s165 = scalar_select %p164, %s20, 0
        %s166 = smul.addr %s165, 8
        %s167 = scalar_lea.vmem %s0, %s166
        %p168 = pneg %p48
        %p169 = pneg %p45
        %p170 = scmp.lt.s32.totalorder %s20, 0
        %s171 = scalar_select %p170, %s20, 0
        %s172 = smul.addr %s171, 4
        %s173 = scalar_lea.vmem %s1, %s172
        %p174 = pneg %p74
        %p175 = pneg %p71
        %p176 = pneg %p95
        %p177 = pneg %p92
        %p178 = pneg %p121
        %p179 = pneg %p118
        %p180 = scmp.lt.s32.totalorder %s20, 0
        %s181 = scalar_select %p180, %s20, 0
        %s182 = smul.addr %s181, 8
        %s183 = scalar_lea.vmem %s0, %s182
        %p184 = scmp.lt.s32.totalorder %s20, 0
        %s185 = scalar_select %p184, %s20, 0
        %s186 = smul.addr %s185, 4
        %s187 = scalar_lea.vmem %s1, %s186
        %p188 = scmp.eq.s32.totalorder %s19, 0
        %p189 = scmp.eq.s32.totalorder %s20, 0
        %p190 = pnand %p188, %p189
        %p191 = pneg %p190
        // Predicated region
        $region33: #{tpu_custom_call.1} parent=31 // pred_check
          _
        $region34: #{tpu_custom_call.1} parent=31 // pred_check_branch
          %193 = sbr.rel (%p190) target = $region36
        $region35: #{tpu_custom_call.1} parent=31 // pred_region
          %vm194 = vcmask 7168
          %195 = vst.msk [vmem:[#allocation2] sm:$0xff] %vm194, 0.0
          %196 = vst.msk [vmem:[#allocation3] sm:$0xff] %vm194, 0.0
          %vm197 = vcmask 5120
          %198 = vst.msk [vmem:[#allocation4] sm:$0x3f] %vm197, 0.0
          %199 = vst.msk [vmem:[#allocation5] sm:$0x3f] %vm197, 0.0
        $region36: #{tpu_custom_call.1} parent=31 // pred_fallthru
          _
        %v200 = vld [vmem:[%s183] sm:$0xff]
        %v201 = vld [vmem:[%s183 + $0x8] sm:$0xff]
        %v202 = vld [vmem:[%s2] sm:$0xff]
        %vm203 = vcmask 130048
        %v205 = vsel %vm203, %v202, 0
        %207 = vmatprep.subr.mxu0 0.0
        %208 = vmatpush1.msra.mxu0 0.0
        %209 = vmatprep.subr.mxu0 0.0
        %210 = vmatpush1.msra.mxu0 0.0
        %211 = vmatprep.subr.mxu0 0.0
        %212 = vmatpush1.msra.mxu0 0.0
        %213 = vmatprep.subr.mxu0 0.0
        %214 = vmatpush1.msra.mxu0 0.0
        %215 = vmatprep.subr.mxu0 0.0
        %216 = vmatpush1.msra.mxu0 0.0
        %217 = vmatprep.subr.mxu0 0.0
        %218 = vmatpush1.msra.mxu0 0.0
        %219 = vmatprep.subr.mxu0 0.0
        %220 = vmatpush1.msra.mxu0 0.0
        %221 = vmatprep.subr.mxu0 0.0
        %222 = vmatpush1.msra.mxu0 0.0
        %223 = vmatprep.subr.mxu0 0.0
        %224 = vmatpush1.msra.mxu0 0.0
        %225 = vmatprep.subr.mxu0 0.0
        %226 = vmatpush1.msra.mxu0 0.0
        %227 = vmatprep.subr.mxu0 0.0
        %228 = vmatpush1.msra.mxu0 0.0
        %229 = vmatprep.subr.mxu0 0.0
        %230 = vmatpush1.msra.mxu0 0.0
        %231 = vmatprep.subr.mxu0 0.0
        %232 = vmatpush1.msra.mxu0 0.0
        %233 = vmatprep.subr.mxu0 0.0
        %234 = vmatpush1.msra.mxu0 0.0
        %235 = vmatprep.subr.mxu0 0.0
        %236 = vmatpush1.msra.mxu0 %v201
        %237 = vmatprep.subr.mxu0 0.0
        %238 = vmatpush1.msra.mxu0 %v200
        %239 = vmatprep.subr.mxu0 0.0
        %240 = vmatpush2.msra.mxu0 0.0
        %241 = vmatprep.subr.mxu0 0.0
        %242 = vmatpush2.msra.mxu0 0.0
        %243 = vmatprep.subr.mxu0 0.0
        %244 = vmatpush2.msra.mxu0 0.0
        %245 = vmatprep.subr.mxu0 0.0
        %246 = vmatpush2.msra.mxu0 0.0
        %247 = vmatprep.subr.mxu0 0.0
        %248 = vmatpush2.msra.mxu0 0.0
        %249 = vmatprep.subr.mxu0 0.0
        %250 = vmatpush2.msra.mxu0 0.0
        %251 = vmatprep.subr.mxu0 0.0
        %252 = vmatpush2.msra.mxu0 0.0
        %253 = vmatprep.subr.mxu0 0.0
        %254 = vmatpush2.msra.mxu0 0.0
        %255 = vmatprep.subr.mxu0 0.0
        %256 = vmatpush2.msra.mxu0 0.0
        %257 = vmatprep.subr.mxu0 0.0
        %258 = vmatpush2.msra.mxu0 0.0
        %259 = vmatprep.subr.mxu0 0.0
        %260 = vmatpush2.msra.mxu0 0.0
        %261 = vmatprep.subr.mxu0 0.0
        %262 = vmatpush2.msra.mxu0 0.0
        %263 = vmatprep.subr.mxu0 0.0
        %264 = vmatpush2.msra.mxu0 0.0
        %265 = vmatprep.subr.mxu0 0.0
        %266 = vmatpush2.msra.mxu0 0.0
        %267 = vmatprep.subr.mxu0 0.0
        %268 = vmatpush2.msra.mxu0 0.0
        %269 = vmatprep.subr.mxu0 0.0
        %270 = vmatpush2.msra.mxu0 0.0
        %271 = vmatprep.mubr.f32.mxu0 0.0
        %272 = vmatmul.mubr.f32.gmra.mxu0 %v205
        %v273 = vpop.f32.mrf.mxu0
        %v274 = vadd.f32 0.0, %v273
        %v275 = vpop.f32.mrf.mxu0
        %276 = vdwg.mxu0
        // Predicated region
        $region37: #{tpu_custom_call.1} parent=31 // pred_check
          %p277 = pneg %p188
        $region38: #{tpu_custom_call.1} parent=31 // pred_check_branch
          %279 = sbr.rel (%p277) target = $region40
        $region39: #{tpu_custom_call.1} parent=31 // pred_region
          %v280 = vld [vmem:[#allocation2] sm:$0xff]
          %281 = vadd.xlane.f32.xlu0 %v274
          %v282 = vpop.xlane.xlu0 %281
          %v283 = vadd.f32 %v280, %v282
          %vm284 = vcmask 7168
          %285 = vst.msk [vmem:[#allocation2] sm:$0xff] %vm284, %v283
          %v286 = vld [vmem:[#allocation3] sm:$0xff]
          %v287 = vmul.f32 %v274, %v274
          %288 = vadd.xlane.f32.xlu0 %v287
          %v289 = vpop.xlane.xlu0 %288
          %v290 = vadd.f32 %v286, %v289
          %291 = vst.msk [vmem:[#allocation3] sm:$0xff] %vm284, %v290
          %292 = vst [vmem:[#allocation6] sm:$0x1] 0.0
        $region40: #{tpu_custom_call.1} parent=31 // pred_fallthru
          _
        %p293 = scmp.gt.s32.totalorder %s19, 0
        // Predicated region
        $region41: #{tpu_custom_call.1} parent=31 // pred_check
          %p294 = pneg %p293
        $region42: #{tpu_custom_call.1} parent=31 // pred_check_branch
          %296 = sbr.rel (%p294) target = $region44
        $region43: #{tpu_custom_call.1} parent=31 // pred_region
          %v297 = vld [vmem:[%s187] sm:$0xf]
          %v298 = vld [vmem:[%s2 + $0x18] sm:$0xff]
          %v299 = vld [vmem:[#allocation2] sm:$0xff]
          %v300 = vmul.f32 %v299, 0.125
          %v301 = vld [vmem:[#allocation3] sm:$0xff]
          %v302 = vmul.f32 %v301, 0.125
          %v303 = vmul.f32 %v300, %v300
          %v304 = vsub.f32 %v302, %v303
          %v305 = vmax.f32 %v304, 0.0
          %v306 = vadd.f32 %v305, 1e-05
          %v307 = vrsqrt.pop %v306
          %v308 = vmul.f32 %v298, %v307
          %310 = vset.pattern.permute.xlu0 0
          %311 = vperm.xlu0 %310, %v300
          %v312 = vpop.permute.xlu0 %311
          %v314 = vsub.f32 %v274, %v312
          %316 = vset.pattern.permute.xlu0 0
          %317 = vperm.xlu0 %316, %v308
          %v318 = vpop.permute.xlu0 %317
          %v320 = vmul.f32 %v314, %v318
          %322 = vset.pattern.permute.xlu0 1
          %323 = vperm.xlu0 %322, %v298
          %v324 = vpop.permute.xlu0 %323
          %v326 = vadd.f32 %v320, %v324
          %v327 = vmax.f32 %v326, 0.0
          %v328 = vlaneseq
          %v329 = vand.u32 %v328, 127
          %s330 = smul.u32 %s20, 128
          %v331 = vstv %s330
          %v332 = vadd.s32 %v329, %v331
          %vm333 = vcmp.lt.s32.totalorder %v332, 8
          %v334 = vsel %vm333, 1, 0
          %vm335 = vcmp.eq.s32.totalorder %v334, 1
          %v336 = vsel %vm335, %v327, 0.0
          %v337 = vld [vmem:[%s2 + $0x8] sm:$0x3f]
          %v338 = vld [vmem:[%s2 + $0x10] sm:$0x3f]
          %vm339 = vcmask 31744
          %v341 = vsel %vm339, %v338, 0
          %vm343 = vcmask 1043456
          %v345 = vsel %vm343, %v297, 0
          %347 = vmatprep.subr.mxu0 0.0
          %348 = vmatpush1.msra.mxu0 0.0
          %349 = vmatprep.subr.mxu0 0.0
          %350 = vmatpush1.msra.mxu0 0.0
          %351 = vmatprep.subr.mxu0 0.0
          %352 = vmatpush1.msra.mxu0 0.0
          %353 = vmatprep.subr.mxu0 0.0
          %354 = vmatpush1.msra.mxu0 0.0
          %355 = vmatprep.subr.mxu0 0.0
          %356 = vmatpush1.msra.mxu0 0.0
          %357 = vmatprep.subr.mxu0 0.0
          %358 = vmatpush1.msra.mxu0 0.0
          %359 = vmatprep.subr.mxu0 0.0
          %360 = vmatpush1.msra.mxu0 0.0
          %361 = vmatprep.subr.mxu0 0.0
          %362 = vmatpush1.msra.mxu0 0.0
          %363 = vmatprep.subr.mxu0 0.0
          %364 = vmatpush1.msra.mxu0 0.0
          %365 = vmatprep.subr.mxu0 0.0
          %366 = vmatpush1.msra.mxu0 0.0
          %367 = vmatprep.subr.mxu0 0.0
          %368 = vmatpush1.msra.mxu0 0.0
          %369 = vmatprep.subr.mxu0 0.0
          %370 = vmatpush1.msra.mxu0 0.0
          %371 = vmatprep.subr.mxu0 0.0
          %372 = vmatpush1.msra.mxu0 0.0
          %373 = vmatprep.subr.mxu0 0.0
          %374 = vmatpush1.msra.mxu0 0.0
          %375 = vmatprep.subr.mxu0 0.0
          %376 = vmatpush1.msra.mxu0 0.0
          %377 = vmatprep.subr.mxu0 0.0
          %378 = vmatpush1.msra.mxu0 %v345
          %379 = vmatprep.subr.mxu0 0.0
          %380 = vmatpush2.msra.mxu0 0.0
          %381 = vmatprep.subr.mxu0 0.0
          %382 = vmatpush2.msra.mxu0 0.0
          %383 = vmatprep.subr.mxu0 0.0
          %384 = vmatpush2.msra.mxu0 0.0
          %385 = vmatprep.subr.mxu0 0.0
          %386 = vmatpush2.msra.mxu0 0.0
          %387 = vmatprep.subr.mxu0 0.0
          %388 = vmatpush2.msra.mxu0 0.0
          %389 = vmatprep.subr.mxu0 0.0
          %390 = vmatpush2.msra.mxu0 0.0
          %391 = vmatprep.subr.mxu0 0.0
          %392 = vmatpush2.msra.mxu0 0.0
          %393 = vmatprep.subr.mxu0 0.0
          %394 = vmatpush2.msra.mxu0 0.0
          %395 = vmatprep.subr.mxu0 0.0
          %396 = vmatpush2.msra.mxu0 0.0
          %397 = vmatprep.subr.mxu0 0.0
          %398 = vmatpush2.msra.mxu0 0.0
          %399 = vmatprep.subr.mxu0 0.0
          %400 = vmatpush2.msra.mxu0 0.0
          %401 = vmatprep.subr.mxu0 0.0
          %402 = vmatpush2.msra.mxu0 0.0
          %403 = vmatprep.subr.mxu0 0.0
          %404 = vmatpush2.msra.mxu0 0.0
          %405 = vmatprep.subr.mxu0 0.0
          %406 = vmatpush2.msra.mxu0 0.0
          %407 = vmatprep.subr.mxu0 0.0
          %408 = vmatpush2.msra.mxu0 0.0
          %409 = vmatprep.subr.mxu0 0.0
          %410 = vmatpush2.msra.mxu0 0.0
          %411 = vmatprep.mubr.f32.mxu0 0.0
          %412 = vmatmul.mubr.f32.gmra.mxu0 %v341
          %v413 = vpop.f32.mrf.mxu0
          %v414 = vadd.f32 0.0, %v413
          %v415 = vpop.f32.mrf.mxu0
          %416 = vdwg.mxu0
          %vm417 = vcmask 64512
          %v419 = vsel %vm417, %v337, 0
          %421 = vmatprep.subr.mxu0 0.0
          %422 = vmatpush1.msra.mxu0 0.0
          %423 = vmatprep.subr.mxu0 0.0
          %424 = vmatpush1.msra.mxu0 0.0
          %425 = vmatprep.subr.mxu0 0.0
          %426 = vmatpush1.msra.mxu0 0.0
          %427 = vmatprep.subr.mxu0 0.0
          %428 = vmatpush1.msra.mxu0 0.0
          %429 = vmatprep.subr.mxu0 0.0
          %430 = vmatpush1.msra.mxu0 0.0
          %431 = vmatprep.subr.mxu0 0.0
          %432 = vmatpush1.msra.mxu0 0.0
          %433 = vmatprep.subr.mxu0 0.0
          %434 = vmatpush1.msra.mxu0 0.0
          %435 = vmatprep.subr.mxu0 0.0
          %436 = vmatpush1.msra.mxu0 0.0
          %437 = vmatprep.subr.mxu0 0.0
          %438 = vmatpush1.msra.mxu0 0.0
          %439 = vmatprep.subr.mxu0 0.0
          %440 = vmatpush1.msra.mxu0 0.0
          %441 = vmatprep.subr.mxu0 0.0
          %442 = vmatpush1.msra.mxu0 0.0
          %443 = vmatprep.subr.mxu0 0.0
          %444 = vmatpush1.msra.mxu0 0.0
          %445 = vmatprep.subr.mxu0 0.0
          %446 = vmatpush1.msra.mxu0 0.0
          %447 = vmatprep.subr.mxu0 0.0
          %448 = vmatpush1.msra.mxu0 0.0
          %449 = vmatprep.subr.mxu0 0.0
          %450 = vmatpush1.msra.mxu0 0.0
          %451 = vmatprep.subr.mxu0 0.0
          %452 = vmatpush1.msra.mxu0 %v336
          %453 = vmatprep.subr.mxu0 0.0
          %454 = vmatpush2.msra.mxu0 0.0
          %455 = vmatprep.subr.mxu0 0.0
          %456 = vmatpush2.msra.mxu0 0.0
          %457 = vmatprep.subr.mxu0 0.0
          %458 = vmatpush2.msra.mxu0 0.0
          %459 = vmatprep.subr.mxu0 0.0
          %460 = vmatpush2.msra.mxu0 0.0
          %461 = vmatprep.subr.mxu0 0.0
          %462 = vmatpush2.msra.mxu0 0.0
          %463 = vmatprep.subr.mxu0 0.0
          %464 = vmatpush2.msra.mxu0 0.0
          %465 = vmatprep.subr.mxu0 0.0
          %466 = vmatpush2.msra.mxu0 0.0
          %467 = vmatprep.subr.mxu0 0.0
          %468 = vmatpush2.msra.mxu0 0.0
          %469 = vmatprep.subr.mxu0 0.0
          %470 = vmatpush2.msra.mxu0 0.0
          %471 = vmatprep.subr.mxu0 0.0
          %472 = vmatpush2.msra.mxu0 0.0
          %473 = vmatprep.subr.mxu0 0.0
          %474 = vmatpush2.msra.mxu0 0.0
          %475 = vmatprep.subr.mxu0 0.0
          %476 = vmatpush2.msra.mxu0 0.0
          %477 = vmatprep.subr.mxu0 0.0
          %478 = vmatpush2.msra.mxu0 0.0
          %479 = vmatprep.subr.mxu0 0.0
          %480 = vmatpush2.msra.mxu0 0.0
          %481 = vmatprep.subr.mxu0 0.0
          %482 = vmatpush2.msra.mxu0 0.0
          %483 = vmatprep.subr.mxu0 0.0
          %484 = vmatpush2.msra.mxu0 0.0
          %485 = vmatprep.mubr.f32.mxu0 0.0
          %486 = vmatmul.mubr.f32.gmra.mxu0 %v419
          %v487 = vpop.f32.mrf.mxu0
          %v488 = vadd.f32 %v414, %v487
          %v489 = vpop.f32.mrf.mxu0
          %490 = vdwg.mxu0
          %p491 = scmp.eq.s32.totalorder %s19, 1
          // Predicated region
          $region45: #{tpu_custom_call.1} parent=43 // pred_check
            %p492 = pneg %p491
          $region46: #{tpu_custom_call.1} parent=43 // pred_check_branch
            %494 = sbr.rel (%p492) target = $region48
          $region47: #{tpu_custom_call.1} parent=43 // pred_region
            %v495 = vld [vmem:[#allocation4] sm:$0x3f]
            %vm496 = vcmask 1045504
            %v497 = vsel %vm496, %v488, 0.0
            %498 = vadd.xlane.f32.xlu0 %v497
            %v499 = vpop.xlane.xlu0 %498
            %v500 = vadd.f32 %v495, %v499
            %vm501 = vcmask 5120
            %502 = vst.msk [vmem:[#allocation4] sm:$0x3f] %vm501, %v500
            %v503 = vld [vmem:[#allocation5] sm:$0x3f]
            %v504 = vmul.f32 %v488, %v488
            %v505 = vsel %vm496, %v504, 0.0
            %506 = vadd.xlane.f32.xlu0 %v505
            %v507 = vpop.xlane.xlu0 %506
            %v508 = vadd.f32 %v503, %v507
            %509 = vst.msk [vmem:[#allocation5] sm:$0x3f] %vm501, %v508
            %510 = vst [vmem:[#allocation6] sm:$0x1] 0.0
          $region48: #{tpu_custom_call.1} parent=43 // pred_fallthru
            _
          %p511 = scmp.eq.s32.totalorder %s19, 2
          // Predicated region
          $region49: #{tpu_custom_call.1} parent=43 // pred_check
            %p512 = pneg %p511
          $region50: #{tpu_custom_call.1} parent=43 // pred_check_branch
            %514 = sbr.rel (%p512) target = $region52
          $region51: #{tpu_custom_call.1} parent=43 // pred_region
            %v515 = vld [vmem:[%s2 + $0x18] sm:$0x3f]
            %v516 = vld [vmem:[%s2 + $0x18] sm:$0x1]
            %v517 = vld [vmem:[#allocation4] sm:$0x3f]
            %v518 = vmul.f32 %v517, 0.125
            %v519 = vld [vmem:[#allocation5] sm:$0x3f]
            %v520 = vmul.f32 %v519, 0.125
            %v521 = vmul.f32 %v518, %v518
            %v522 = vsub.f32 %v520, %v521
            %v523 = vmax.f32 %v522, 0.0
            %v524 = vadd.f32 %v523, 1e-05
            %v525 = vrsqrt.pop %v524
            %527 = vrot.lane.b32.xlu0 %v525, 2
            %v528 = vpop.permute.xlu0 %527
            %v530 = vmul.f32 %v515, %v528
            %532 = vset.pattern.permute.xlu0 0
            %533 = vperm.xlu0 %532, %v518
            %v534 = vpop.permute.xlu0 %533
            %v536 = vsub.f32 %v488, %v534
            %538 = vset.pattern.permute.xlu0 2
            %539 = vperm.xlu0 %538, %v530
            %v540 = vpop.permute.xlu0 %539
            %v542 = vmul.f32 %v536, %v540
            %544 = vset.pattern.permute.xlu0 3
            %545 = vperm.xlu0 %544, %v515
            %v546 = vpop.permute.xlu0 %545
            %v548 = vadd.f32 %v542, %v546
            %v549 = vmax.f32 %v548, 0.0
            %550 = vset.pattern.permute.xlu0 4
            %551 = vperm.xlu0 %550, %v515
            %v552 = vpop.permute.xlu0 %551
            %v554 = vmul.f32 %v552, %v549
            %vm555 = vcmask 1045504
            %v556 = vsel %vm555, %v554, 0.0
            %v557 = vrot.slane %v556, 4
            %v558 = vadd.f32 %v556, %v557
            %v559 = vrot.slane %v558, 2
            %v560 = vadd.f32 %v558, %v559
            %v561 = vrot.slane %v560, 1
            %v562 = vadd.f32 %v560, %v561
            %564 = vset.pattern.permute.xlu0 5
            %565 = vperm.xlu0 %564, %v516
            %v566 = vpop.permute.xlu0 %565
            %v568 = vadd.f32 %v562, %v566
            %569 = vst [vmem:[#allocation6] sm:$0x1] %v568
          $region52: #{tpu_custom_call.1} parent=43 // pred_fallthru
            _
        $region44: #{tpu_custom_call.1} parent=31 // pred_fallthru
          _
        // Predicated region
        $region53: #{tpu_custom_call.1} parent=31 // pred_check
          %p570 = pneg %p118
        $region54: #{tpu_custom_call.1} parent=31 // pred_check_branch
          %572 = sbr.rel (%p570) target = $region56
        $region55: #{tpu_custom_call.1} parent=31 // pred_region
          %s574 = ssub.s32 16, 16
          %575 = vsyncadd [#allocation7], %s574
          %s576 = smul.addr %s20, 16
          %s577 = scalar_lea.hbm %s3, %s576
          %s579 = sshll.u32 [#allocation6], 4
          %s580 = int_to_ptr.vmem [resolvable:$true] %s579
          %582 = dma.vmem_to_hbm [thread:$0]  %s580, 16, %s577, [#allocation7]
        $region56: #{tpu_custom_call.1} parent=31 // pred_fallthru
          _
        // Predicated region
        $region57: #{tpu_custom_call.1} parent=31 // pred_check
          %p583 = pneg %p118
        $region58: #{tpu_custom_call.1} parent=31 // pred_check_branch
          %585 = sbr.rel (%p583) target = $region60
        $region59: #{tpu_custom_call.1} parent=31 // pred_region
          %586 = dma.done [#allocation7], 16
        $region60: #{tpu_custom_call.1} parent=31 // pred_fallthru
          _
      $region32: #{tpu_custom_call.1} parent=5 // pred_fallthru
        _
      %p587 = scmp.le.s32.totalorder 2, %s10
      // Predicated region
      $region61: #{tpu_custom_call.1} parent=5 // pred_check
        %p588 = pneg %p587
      $region62: #{tpu_custom_call.1} parent=5 // pred_check_branch
        %590 = sbr.rel (%p588) target = $region64
      $region63: #{tpu_custom_call.1} parent=5 // pred_region
        %s591 = ssub.s32 %s10, 2
      $region64: #{tpu_custom_call.1} parent=5 // pred_fallthru
        _
    $region6: #{tpu_custom_call.1} parent=1 // loop_footer
      %s14 = sadd.s32 1, %s10
    $region7: #{tpu_custom_call.1} parent=1 // loop_footer_branch
      %9 = sbr.rel target = $region3
    $region8: #{tpu_custom_call.1} parent=1 // loop_exit
      _
    %592 = vsyncpa [#allocation7], 1
    %s593 = scalar_lea.sflag [#allocation7], 1
    %594 = vsyncpa %s593, 1

</llo_original>
